<compile_context>
chip_gen: v5e
topology: v5e:2x2
jax: 0.10.0
libtpu: 0.0.40
codegen_flags: <defaults>
</compile_context>

<pallas_src>
import functools

import jax
import jax.numpy as jnp
from jax import lax
from jax.experimental import pallas as pl
from jax.experimental.pallas import tpu as pltpu

LANE = 128
SUBLANES = 8
NSUMS = 5                    # partial sums: [p*t, p, t, focal, bce]
BLOCK_ROWS_TARGET = 8192     # rows of 128 lanes per DMA block (per grid step)
CHUNK_ROWS_TARGET = 1024     # rows per inner-loop chunk (bounds live temporaries)


def _round_up(x, m):
    return (x + m - 1) // m * m


def _sublane_multiple(dtype):
    # f32 -> 8, bf16/f16 -> 16, int8/fp8 -> 32
    return max(SUBLANES, SUBLANES * 4 // jnp.dtype(dtype).itemsize)


def _num_tensorcores():
    # TODO(synk): switch to pltpu.get_tpu_info() once per-chip TC count is
    # exposed there; device_kind matching is enough to gate the v7x 2-TC split.
    try:
        kind = jax.devices()[0].device_kind.lower()
    except Exception:
        return 1
    return 2 if "v7" in kind else 1


def _combined_loss_kernel(p_ref, t_ref, out_ref, *,
                          block_rows, chunk_rows, blocks_per_split,
                          rows_valid, needs_mask, hard_targets,
                          focal_alpha, focal_gamma, focal_weight):
    c = pl.program_id(0)   # split axis (one per TensorCore on v7x)
    j = pl.program_id(1)   # streaming reduction axis

    @pl.when(j == 0)
    def _():
        out_ref[...] = jnp.zeros_like(out_ref)

    nchunks = block_rows // chunk_rows
    logical_block = c * blocks_per_split + j
    block_row0 = logical_block * block_rows

    def chunk_sums(i, carry, masked):
        s_pt, s_p, s_t, s_f, s_b = carry
        r0 = i * chunk_rows
        if not isinstance(r0, int):
            r0 = pl.multiple_of(r0, chunk_rows)
        # Load the native-dtype chunk straight from the VMEM block; cast to f32
        # per chunk so only a few small temporaries are ever live.
        p = p_ref[pl.ds(r0, chunk_rows), :].astype(jnp.float32)
        t = t_ref[pl.ds(r0, chunk_rows), :].astype(jnp.float32)

        if masked:
            # Zero contributions from rows past the logical end of the data
            # (ragged last block / clamped-index OOB re-reads). This must
            # happen BEFORE any arithmetic touches the garbage rows.
            row_ids = (block_row0 + r0
                       + lax.broadcasted_iota(jnp.int32, p.shape, 0))
            valid = row_ids < rows_valid
            p = jnp.where(valid, p, 0.0)
            t = jnp.where(valid, t, 0.0)

        if hard_targets:
            # Binary targets: single clamped log (halves EUP work); identical
            # to the soft path when t is exactly {0, 1}.
            t_pos = t > 0.5
            p_sel = jnp.where(t_pos, p, 1.0 - p)
            bce = -jnp.maximum(jnp.log(p_sel), -100.0)
            one_minus_pt = 1.0 - p_sel
        else:
            # Soft-target path: torch-style clamp(log, min=-100) before the
            # t-multiply (avoids 0 * -inf NaNs, matches nn.BCELoss exactly).
            log_p = jnp.maximum(jnp.log(p), -100.0)
            log_1mp = jnp.maximum(jnp.log(1.0 - p), -100.0)
            bce = -(t * log_p + (1.0 - t) * log_1mp)
            one_minus_pt = 1.0 - (p * t + (1.0 - p) * (1.0 - t))

        def vsum(x):
            # (chunk_rows, LANE) -> (8, LANE): vreg-wise VALU adds only.
            return jnp.sum(x.reshape(-1, SUBLANES, LANE), axis=0)

        s_pt = s_pt + vsum(p * t)
        s_p = s_p + vsum(p)
        s_t = s_t + vsum(t)
        s_b = s_b + vsum(bce)

        if focal_weight != 0.0:
            g = float(focal_gamma)
            if g == 0.0:
                focal_pow = jnp.ones_like(one_minus_pt)
            elif g.is_integer() and 1 <= int(g) <= 4:
                focal_pow = one_minus_pt                # gamma==2 -> one extra mul
                for _ in range(int(g) - 1):
                    focal_pow = focal_pow * one_minus_pt
            else:
                focal_pow = jnp.power(one_minus_pt, g)  # general (EUP exp+log)
            if float(focal_alpha) == 1.0:
                alpha_t = t
            elif hard_targets:
                alpha_t = jnp.where(t > 0.5, focal_alpha, 1.0 - focal_alpha)
            else:
                alpha_t = focal_alpha * t + (1.0 - focal_alpha) * (1.0 - t)
            s_f = s_f + vsum(alpha_t * focal_pow * bce)

        return s_pt, s_p, s_t, s_f, s_b

    def accumulate(masked):
        zeros = tuple(jnp.zeros((SUBLANES, LANE), jnp.float32)
                      for _ in range(NSUMS))
        if nchunks == 1:
            sums = chunk_sums(0, zeros, masked)
        else:
            sums = lax.fori_loop(
                0, nchunks,
                lambda i, carry: chunk_sums(i, carry, masked),
                zeros, unroll=True)
        for k in range(NSUMS):
            out_ref[0, k] += sums[k]

    if needs_mask:
        # Only the last (and OOB) logical blocks pay for the row mask.
        fully_valid = (block_row0 + block_rows) <= rows_valid

        @pl.when(fully_valid)
        def _():
            accumulate(masked=False)

        @pl.when(jnp.logical_not(fully_valid))
        def _():
            accumulate(masked=True)
    else:
        accumulate(masked=False)


def combined_loss(predictions, targets, *,
                  dice_weight=0.5, focal_weight=0.3, bce_weight=0.2,
                  focal_alpha=1.0, focal_gamma=2.0, dice_smooth=1e-6,
                  hard_targets=False):
    def stream(x):
        x = jnp.asarray(x).reshape(-1)
        if not jnp.issubdtype(x.dtype, jnp.floating):
            x = x.astype(jnp.float32)     # only ints/bools get promoted
        return x                          # floats stream in native dtype

    p = stream(predictions)
    t = stream(targets)
    n_elem = p.shape[0]

    # Pad only when N is not a LANE multiple (rare for NCHW segmentation
    # shapes); zero padding contributes exactly 0 to every partial sum.
    # TODO(synk): fully pad-free ragged tail would need a 1-D manual-DMA epilogue.
    pad = (-n_elem) % LANE
    if pad:
        p = jnp.pad(p, (0, pad))
        t = jnp.pad(t, (0, pad))
    rows = (n_elem + pad) // LANE
    p2 = p.reshape(rows, LANE)
    t2 = t.reshape(rows, LANE)

    sub_mult = max(_sublane_multiple(p2.dtype), _sublane_multiple(t2.dtype))
    chunk_rows = min(CHUNK_ROWS_TARGET, _round_up(rows, sub_mult))
    block_rows = min(BLOCK_ROWS_TARGET, _round_up(rows, chunk_rows))
    total_blocks = pl.cdiv(rows, block_rows)

    def run(nsplit):
        blocks_per_split = pl.cdiv(total_blocks, nsplit)
        needs_mask = (nsplit * blocks_per_split * block_rows) != rows

        if nsplit * blocks_per_split == total_blocks:
            in_idx = lambda c, j: (c * blocks_per_split + j, 0)
        else:
            # Logical blocks past the end re-read an in-bounds block; the
            # in-kernel row mask zeroes their contribution.
            in_idx = lambda c, j: (jnp.minimum(c * blocks_per_split + j,
                                               total_blocks - 1), 0)

        kernel = functools.partial(
            _combined_loss_kernel,
            block_rows=block_rows,
            chunk_rows=chunk_rows,
            blocks_per_split=blocks_per_split,
            rows_valid=rows,
            needs_mask=needs_mask,
            hard_targets=hard_targets,
            focal_alpha=float(focal_alpha),
            focal_gamma=float(focal_gamma),
            focal_weight=float(focal_weight),
        )

        # Budget: 2 double-buffered native-dtype input blocks + bounded
        # per-chunk f32 temporaries; headroom included, stays under v7x 64 MiB.
        pipeline_bytes = 2 * block_rows * LANE * (p2.dtype.itemsize
                                                  + t2.dtype.itemsize)
        scratch_bytes = 12 * chunk_rows * LANE * 4
        vmem_limit = int(min(48 << 20,
                             max(16 << 20,
                                 2 * (pipeline_bytes + scratch_bytes))))

        if nsplit > 1:
            dim_sem = (pltpu.CORE_PARALLEL, pltpu.ARBITRARY)  # real 2-TC split
        else:
            dim_sem = (pltpu.ARBITRARY, pltpu.ARBITRARY)

        return pl.pallas_call(
            kernel,
            out_shape=jax.ShapeDtypeStruct((nsplit, NSUMS, SUBLANES, LANE),
                                           jnp.float32),
            grid_spec=pltpu.PrefetchScalarGridSpec(
                num_scalar_prefetch=0,
                grid=(nsplit, blocks_per_split),
                in_specs=[
                    pl.BlockSpec((block_rows, LANE), in_idx),
                    pl.BlockSpec((block_rows, LANE), in_idx),
                ],
                out_specs=pl.BlockSpec((1, NSUMS, SUBLANES, LANE),
                                       lambda c, j: (c, 0, 0, 0)),
            ),
            compiler_params=pltpu.CompilerParams(
                dimension_semantics=dim_sem,
                vmem_limit_bytes=vmem_limit),
        )(p2, t2)

    nsplit = 2 if (_num_tensorcores() >= 2 and total_blocks >= 2) else 1
    if nsplit == 2:
        try:
            partials = run(2)
        except Exception:   # conservative fallback to the single-split build
            partials = run(1)
    else:
        partials = run(1)

    # Tiny cross-core / cross-sublane / cross-lane reduction + scalar assembly.
    sums = jnp.sum(partials, axis=(0, 2, 3))        # (NSUMS,)
    intersection, sum_p, sum_t = sums[0], sums[1], sums[2]
    sum_focal, sum_bce = sums[3], sums[4]

    n = jnp.float32(n_elem)
    dice_loss = 1.0 - (2.0 * intersection + dice_smooth) / (sum_p + sum_t + dice_smooth)
    focal_mean = sum_focal / n
    bce_mean = sum_bce / n
    return (dice_weight * dice_loss
            + focal_weight * focal_mean
            + bce_weight * bce_mean)


def combined_loss_ref(predictions, targets, *,
                      dice_weight=0.5, focal_weight=0.3, bce_weight=0.2,
                      focal_alpha=1.0, focal_gamma=2.0, dice_smooth=1e-6):
    """Pure-JAX reference mirroring the PyTorch CombinedLoss module."""
    p = predictions.reshape(-1).astype(jnp.float32)
    t = targets.reshape(-1).astype(jnp.float32)
    # Dice
    intersection = jnp.sum(p * t)
    dice = 1.0 - (2.0 * intersection + dice_smooth) / (jnp.sum(p) + jnp.sum(t) + dice_smooth)
    # BCE (elementwise, clamped logs like torch)
    bce_el = -(t * jnp.maximum(jnp.log(p), -100.0)
               + (1.0 - t) * jnp.maximum(jnp.log(1.0 - p), -100.0))
    # Focal
    p_t = p * t + (1.0 - p) * (1.0 - t)
    alpha_t = focal_alpha * t + (1.0 - focal_alpha) * (1.0 - t)
    focal = jnp.mean(alpha_t * jnp.power(1.0 - p_t, focal_gamma) * bce_el)
    bce = jnp.mean(bce_el)
    return dice_weight * dice + focal_weight * focal + bce_weight * bce


if __name__ == "__main__":
    key = jax.random.PRNGKey(0)
    k1, k2 = jax.random.split(key)

    B, C, H, W = 2, 4, 16, 16  # NCHW, as in the PyTorch module
    predictions = jax.nn.sigmoid(jax.random.normal(k1, (B, C, H, W), jnp.float32))
    targets = (jax.random.uniform(k2, (B, C, H, W)) > 0.5).astype(jnp.float32)

    ref = combined_loss_ref(predictions, targets)

    # Default soft-target path (exact module semantics).
    loss = jax.block_until_ready(combined_loss(predictions, targets))
    assert jnp.allclose(loss, ref, atol=1e-5, rtol=1e-5), (loss, ref)

    # Hard-target (binary) specialization: single-log EUP path, same result.
    loss_hard = jax.block_until_ready(
        combined_loss(predictions, targets, hard_targets=True))
    assert jnp.allclose(loss_hard, ref, atol=1e-5, rtol=1e-5), (loss_hard, ref)

    # Native bf16 streaming path (half the HBM traffic vs wrapper f32 upcast).
    pred_bf16 = predictions.astype(jnp.bfloat16)
    tgt_bf16 = targets.astype(jnp.bfloat16)
    loss_bf16 = jax.block_until_ready(combined_loss(pred_bf16, tgt_bf16))
    ref_bf16 = combined_loss_ref(pred_bf16, tgt_bf16)
    assert jnp.allclose(loss_bf16, ref_bf16, atol=1e-5, rtol=1e-5), (loss_bf16, ref_bf16)

    print("KERNEL_OK")
</pallas_src>

<mosaic_0001>
module attributes {stable_mosaic.version = 11 : i64} {
  func.func @_combined_loss_kernel(%arg0: i32, %arg1: i32, %arg2: memref<16x128xf32, #tpu.memory_space<vmem>>, %arg3: memref<16x128xf32, #tpu.memory_space<vmem>>, %arg4: memref<1x5x8x128xf32, #tpu.memory_space<vmem>>) attributes {dimension_semantics = [#tpu.dimension_semantics<arbitrary>, #tpu.dimension_semantics<arbitrary>], iteration_bounds = array<i64: 1, 1>, scalar_prefetch = 0 : i64, scratch_operands = 0 : i64, tpu.core_type = #tpu.core_type<tc>, window_params = [{transform_indices = @transform_0, window_bounds = array<i64: 16, 128>}, {transform_indices = @transform_1, window_bounds = array<i64: 16, 128>}, {transform_indices = @transform_2, window_bounds = array<i64: 1, 5, 8, 128>}]} {
    %c0_i32 = arith.constant 0 : i32
    %0 = arith.cmpi eq, %arg1, %c0_i32 : i32
    %1 = arith.extui %0 : i1 to i32
    %c0_i32_0 = arith.constant 0 : i32
    %2 = arith.cmpi ne, %1, %c0_i32_0 : i32
    scf.if %2 {
      %cst_57 = arith.constant 0.000000e+00 : f32
      %83 = vector.broadcast %cst_57 : f32 to vector<1x5x8x128xf32>
      %c0_58 = arith.constant 0 : index
      %c0_59 = arith.constant 0 : index
      %c0_60 = arith.constant 0 : index
      %c0_61 = arith.constant 0 : index
      %84 = vector.load %arg4[%c0_58, %c0_59, %c0_60, %c0_61] : memref<1x5x8x128xf32, #tpu.memory_space<vmem>>, vector<1x5x8x128xf32>
      tpu.vector_store %arg4[%c0_58, %c0_59, %c0_60, %c0_61], %83 {strides = array<i32>} : memref<1x5x8x128xf32, #tpu.memory_space<vmem>>, vector<1x5x8x128xf32>,
    } else {
    }
    %cst = arith.constant 0.000000e+00 : f32
    %3 = vector.broadcast %cst : f32 to vector<8x128xf32>
    %cst_1 = arith.constant 0.000000e+00 : f32
    %4 = vector.broadcast %cst_1 : f32 to vector<8x128xf32>
    %cst_2 = arith.constant 0.000000e+00 : f32
    %5 = vector.broadcast %cst_2 : f32 to vector<8x128xf32>
    %cst_3 = arith.constant 0.000000e+00 : f32
    %6 = vector.broadcast %cst_3 : f32 to vector<8x128xf32>
    %cst_4 = arith.constant 0.000000e+00 : f32
    %7 = vector.broadcast %cst_4 : f32 to vector<8x128xf32>
    %c0 = arith.constant 0 : index
    %c0_5 = arith.constant 0 : index
    %8 = vector.load %arg2[%c0, %c0_5] : memref<16x128xf32, #tpu.memory_space<vmem>>, vector<16x128xf32>
    %c0_6 = arith.constant 0 : index
    %c0_7 = arith.constant 0 : index
    %9 = vector.load %arg3[%c0_6, %c0_7] : memref<16x128xf32, #tpu.memory_space<vmem>>, vector<16x128xf32>
    %10 = math.log %8 : vector<16x128xf32>
    %cst_8 = arith.constant -1.000000e+02 : f32
    %11 = vector.broadcast %cst_8 : f32 to vector<16x128xf32>
    %12 = arith.maximumf %10, %11 : vector<16x128xf32>
    %cst_9 = arith.constant 1.000000e+00 : f32
    %13 = vector.broadcast %cst_9 : f32 to vector<16x128xf32>
    %14 = arith.subf %13, %8 : vector<16x128xf32>
    %15 = math.log %14 : vector<16x128xf32>
    %cst_10 = arith.constant -1.000000e+02 : f32
    %16 = vector.broadcast %cst_10 : f32 to vector<16x128xf32>
    %17 = arith.maximumf %15, %16 : vector<16x128xf32>
    %18 = arith.mulf %9, %12 : vector<16x128xf32>
    %cst_11 = arith.constant 1.000000e+00 : f32
    %19 = vector.broadcast %cst_11 : f32 to vector<16x128xf32>
    %20 = arith.subf %19, %9 : vector<16x128xf32>
    %21 = arith.mulf %20, %17 : vector<16x128xf32>
    %22 = arith.addf %18, %21 : vector<16x128xf32>
    %cst_12 = arith.constant 0.000000e+00 : f32
    %23 = vector.broadcast %cst_12 : f32 to vector<16x128xf32>
    %24 = arith.subf %23, %22 : vector<16x128xf32>
    %25 = arith.mulf %8, %9 : vector<16x128xf32>
    %cst_13 = arith.constant 1.000000e+00 : f32
    %26 = vector.broadcast %cst_13 : f32 to vector<16x128xf32>
    %27 = arith.subf %26, %8 : vector<16x128xf32>
    %cst_14 = arith.constant 1.000000e+00 : f32
    %28 = vector.broadcast %cst_14 : f32 to vector<16x128xf32>
    %29 = arith.subf %28, %9 : vector<16x128xf32>
    %30 = arith.mulf %27, %29 : vector<16x128xf32>
    %31 = arith.addf %25, %30 : vector<16x128xf32>
    %cst_15 = arith.constant 1.000000e+00 : f32
    %32 = vector.broadcast %cst_15 : f32 to vector<16x128xf32>
    %33 = arith.subf %32, %31 : vector<16x128xf32>
    %34 = arith.mulf %8, %9 : vector<16x128xf32>
    %35 = vector.shape_cast %34 : vector<16x128xf32> to vector<2x8x128xf32>
    %cst_16 = arith.constant dense<0.000000e+00> : vector<8x128xf32>
    %36 = vector.multi_reduction <add>, %35, %cst_16 [0] : vector<2x8x128xf32> to vector<8x128xf32>
    %37 = arith.addf %3, %36 : vector<8x128xf32>
    %38 = vector.shape_cast %8 : vector<16x128xf32> to vector<2x8x128xf32>
    %cst_17 = arith.constant dense<0.000000e+00> : vector<8x128xf32>
    %39 = vector.multi_reduction <add>, %38, %cst_17 [0] : vector<2x8x128xf32> to vector<8x128xf32>
    %40 = arith.addf %4, %39 : vector<8x128xf32>
    %41 = vector.shape_cast %9 : vector<16x128xf32> to vector<2x8x128xf32>
    %cst_18 = arith.constant dense<0.000000e+00> : vector<8x128xf32>
    %42 = vector.multi_reduction <add>, %41, %cst_18 [0] : vector<2x8x128xf32> to vector<8x128xf32>
    %43 = arith.addf %5, %42 : vector<8x128xf32>
    %44 = vector.shape_cast %24 : vector<16x128xf32> to vector<2x8x128xf32>
    %cst_19 = arith.constant dense<0.000000e+00> : vector<8x128xf32>
    %45 = vector.multi_reduction <add>, %44, %cst_19 [0] : vector<2x8x128xf32> to vector<8x128xf32>
    %46 = arith.addf %7, %45 : vector<8x128xf32>
    %47 = arith.mulf %33, %33 : vector<16x128xf32>
    %48 = arith.mulf %9, %47 : vector<16x128xf32>
    %49 = arith.mulf %48, %24 : vector<16x128xf32>
    %50 = vector.shape_cast %49 : vector<16x128xf32> to vector<2x8x128xf32>
    %cst_20 = arith.constant dense<0.000000e+00> : vector<8x128xf32>
    %51 = vector.multi_reduction <add>, %50, %cst_20 [0] : vector<2x8x128xf32> to vector<8x128xf32>
    %52 = arith.addf %6, %51 : vector<8x128xf32>
    %c0_21 = arith.constant 0 : index
    %c0_22 = arith.constant 0 : index
    %c0_23 = arith.constant 0 : index
    %c0_24 = arith.constant 0 : index
    %53 = vector.load %arg4[%c0_21, %c0_22, %c0_23, %c0_24] : memref<1x5x8x128xf32, #tpu.memory_space<vmem>>, vector<1x1x8x128xf32>
    %54 = vector.shape_cast %53 : vector<1x1x8x128xf32> to vector<8x128xf32>
    %55 = arith.addf %54, %37 : vector<8x128xf32>
    %c0_25 = arith.constant 0 : index
    %c0_26 = arith.constant 0 : index
    %c0_27 = arith.constant 0 : index
    %c0_28 = arith.constant 0 : index
    %56 = vector.load %arg4[%c0_25, %c0_26, %c0_27, %c0_28] : memref<1x5x8x128xf32, #tpu.memory_space<vmem>>, vector<1x1x8x128xf32>
    %57 = vector.shape_cast %56 : vector<1x1x8x128xf32> to vector<8x128xf32>
    %58 = vector.shape_cast %55 : vector<8x128xf32> to vector<1x1x8x128xf32>
    tpu.vector_store %arg4[%c0_25, %c0_26, %c0_27, %c0_28], %58 {strides = array<i32>} : memref<1x5x8x128xf32, #tpu.memory_space<vmem>>, vector<1x1x8x128xf32>,
    %c0_29 = arith.constant 0 : index
    %c1 = arith.constant 1 : index
    %c0_30 = arith.constant 0 : index
    %c0_31 = arith.constant 0 : index
    %59 = vector.load %arg4[%c0_29, %c1, %c0_30, %c0_31] : memref<1x5x8x128xf32, #tpu.memory_space<vmem>>, vector<1x1x8x128xf32>
    %60 = vector.shape_cast %59 : vector<1x1x8x128xf32> to vector<8x128xf32>
    %61 = arith.addf %60, %40 : vector<8x128xf32>
    %c0_32 = arith.constant 0 : index
    %c1_33 = arith.constant 1 : index
    %c0_34 = arith.constant 0 : index
    %c0_35 = arith.constant 0 : index
    %62 = vector.load %arg4[%c0_32, %c1_33, %c0_34, %c0_35] : memref<1x5x8x128xf32, #tpu.memory_space<vmem>>, vector<1x1x8x128xf32>
    %63 = vector.shape_cast %62 : vector<1x1x8x128xf32> to vector<8x128xf32>
    %64 = vector.shape_cast %61 : vector<8x128xf32> to vector<1x1x8x128xf32>
    tpu.vector_store %arg4[%c0_32, %c1_33, %c0_34, %c0_35], %64 {strides = array<i32>} : memref<1x5x8x128xf32, #tpu.memory_space<vmem>>, vector<1x1x8x128xf32>,
    %c0_36 = arith.constant 0 : index
    %c2 = arith.constant 2 : index
    %c0_37 = arith.constant 0 : index
    %c0_38 = arith.constant 0 : index
    %65 = vector.load %arg4[%c0_36, %c2, %c0_37, %c0_38] : memref<1x5x8x128xf32, #tpu.memory_space<vmem>>, vector<1x1x8x128xf32>
    %66 = vector.shape_cast %65 : vector<1x1x8x128xf32> to vector<8x128xf32>
    %67 = arith.addf %66, %43 : vector<8x128xf32>
    %c0_39 = arith.constant 0 : index
    %c2_40 = arith.constant 2 : index
    %c0_41 = arith.constant 0 : index
    %c0_42 = arith.constant 0 : index
    %68 = vector.load %arg4[%c0_39, %c2_40, %c0_41, %c0_42] : memref<1x5x8x128xf32, #tpu.memory_space<vmem>>, vector<1x1x8x128xf32>
    %69 = vector.shape_cast %68 : vector<1x1x8x128xf32> to vector<8x128xf32>
    %70 = vector.shape_cast %67 : vector<8x128xf32> to vector<1x1x8x128xf32>
    tpu.vector_store %arg4[%c0_39, %c2_40, %c0_41, %c0_42], %70 {strides = array<i32>} : memref<1x5x8x128xf32, #tpu.memory_space<vmem>>, vector<1x1x8x128xf32>,
    %c0_43 = arith.constant 0 : index
    %c3 = arith.constant 3 : index
    %c0_44 = arith.constant 0 : index
    %c0_45 = arith.constant 0 : index
    %71 = vector.load %arg4[%c0_43, %c3, %c0_44, %c0_45] : memref<1x5x8x128xf32, #tpu.memory_space<vmem>>, vector<1x1x8x128xf32>
    %72 = vector.shape_cast %71 : vector<1x1x8x128xf32> to vector<8x128xf32>
    %73 = arith.addf %72, %52 : vector<8x128xf32>
    %c0_46 = arith.constant 0 : index
    %c3_47 = arith.constant 3 : index
    %c0_48 = arith.constant 0 : index
    %c0_49 = arith.constant 0 : index
    %74 = vector.load %arg4[%c0_46, %c3_47, %c0_48, %c0_49] : memref<1x5x8x128xf32, #tpu.memory_space<vmem>>, vector<1x1x8x128xf32>
    %75 = vector.shape_cast %74 : vector<1x1x8x128xf32> to vector<8x128xf32>
    %76 = vector.shape_cast %73 : vector<8x128xf32> to vector<1x1x8x128xf32>
    tpu.vector_store %arg4[%c0_46, %c3_47, %c0_48, %c0_49], %76 {strides = array<i32>} : memref<1x5x8x128xf32, #tpu.memory_space<vmem>>, vector<1x1x8x128xf32>,
    %c0_50 = arith.constant 0 : index
    %c4 = arith.constant 4 : index
    %c0_51 = arith.constant 0 : index
    %c0_52 = arith.constant 0 : index
    %77 = vector.load %arg4[%c0_50, %c4, %c0_51, %c0_52] : memref<1x5x8x128xf32, #tpu.memory_space<vmem>>, vector<1x1x8x128xf32>
    %78 = vector.shape_cast %77 : vector<1x1x8x128xf32> to vector<8x128xf32>
    %79 = arith.addf %78, %46 : vector<8x128xf32>
    %c0_53 = arith.constant 0 : index
    %c4_54 = arith.constant 4 : index
    %c0_55 = arith.constant 0 : index
    %c0_56 = arith.constant 0 : index
    %80 = vector.load %arg4[%c0_53, %c4_54, %c0_55, %c0_56] : memref<1x5x8x128xf32, #tpu.memory_space<vmem>>, vector<1x1x8x128xf32>
    %81 = vector.shape_cast %80 : vector<1x1x8x128xf32> to vector<8x128xf32>
    %82 = vector.shape_cast %79 : vector<8x128xf32> to vector<1x1x8x128xf32>
    tpu.vector_store %arg4[%c0_53, %c4_54, %c0_55, %c0_56], %82 {strides = array<i32>} : memref<1x5x8x128xf32, #tpu.memory_space<vmem>>, vector<1x1x8x128xf32>,
    return
  }
  func.func @transform_0(%arg0: i32, %arg1: i32) -> (i32, i32) {
    %c1_i32 = arith.constant 1 : i32
    %0 = arith.muli %arg0, %c1_i32 : i32
    %1 = arith.addi %0, %arg1 : i32
    %c0_i32 = arith.constant 0 : i32
    %c0_i32_0 = arith.constant 0 : i32
    return %1, %c0_i32 : i32, i32
  }
  func.func @transform_1(%arg0: i32, %arg1: i32) -> (i32, i32) {
    %c1_i32 = arith.constant 1 : i32
    %0 = arith.muli %arg0, %c1_i32 : i32
    %1 = arith.addi %0, %arg1 : i32
    %c0_i32 = arith.constant 0 : i32
    %c0_i32_0 = arith.constant 0 : i32
    return %1, %c0_i32 : i32, i32
  }
  func.func @transform_2(%arg0: i32, %arg1: i32) -> (i32, i32, i32, i32) {
    %c0_i32 = arith.constant 0 : i32
    %c0_i32_0 = arith.constant 0 : i32
    %c0_i32_1 = arith.constant 0 : i32
    %c0_i32_2 = arith.constant 0 : i32
    return %arg0, %c0_i32, %c0_i32_0, %c0_i32_1 : i32, i32, i32, i32
  }
}

</mosaic_0001>

<llo_original>
// kernel: tpu_custom_call.1
$region0: #{tpu_custom_call.1}
  #allocation0 [shape = 'u32[]', space=smem, size = 0x4, offset = 0x4, fixed_abs, tag = 'smem constant byte address 0x4 - core index']
  #allocation1 [shape = 'u32[72,128]{1,0:T(1,128)}', space=vmem, size = 0x9000, scoped, tag = 'internal scratch']
  %s0 = inlined_call_operand.hbm [shape: f32[16,128], index: 0, kind: input, shape index: {}]
  %s1 = inlined_call_operand.hbm [shape: f32[16,128], index: 1, kind: input, shape index: {}]
  %s2 = inlined_call_operand.hbm [shape: f32[1,5,8,128], index: 2, kind: output, shape index: {}]
  %s3 = sld [smem:[#allocation0]]
  $region30: #{tpu_custom_call.1} parent=0
    _
  %s5 = ssub.s32 1, %s3
  %s6 = scalar_select 0, %s5, %s3
  $region1: #{tpu_custom_call.1} parent=0
    #allocation2 [shape = 'u8[8192]{0}', space=vmem, size = 0x2000, scoped, tag = 'input window, operand 0, single buffered']
    #allocation3 [shape = 's32[1]{0}', space=sflag, size = 0x4, scoped, tag = 'scoped memory for tpu_custom_call.1']
    #allocation4 [shape = 's32[1]{0}', space=sflag, size = 0x4, scoped, tag = 'scoped memory for tpu_custom_call.1']
    #allocation5 [shape = 'u8[8192]{0}', space=vmem, size = 0x2000, scoped, tag = 'input window, operand 1, single buffered']
    #allocation6 [shape = 's32[1]{0}', space=sflag, size = 0x4, scoped, tag = 'scoped memory for tpu_custom_call.1']
    #allocation7 [shape = 'u8[20480]{0}', space=vmem, size = 0x5000, scoped, tag = 'output window, operand 0, single buffered']
    %7 = vsyncpa [#allocation3], 0
    %8 = vsyncpa [#allocation6], 0
    %9 = vsyncpa [#allocation4], 0
    // Predicated region
    $region2: #{tpu_custom_call.1} parent=1 // pred_check
      _
    $region3: #{tpu_custom_call.1} parent=1 // pred_check_branch
      %11 = sbr.rel (0) target = $region5
    $region4: #{tpu_custom_call.1} parent=1 // pred_region
      %s12 = sadd.s32 0, 0
      %s13 = smul.u32 2, %s12
      %15 = vsyncadd [#allocation3], 0
      %s16 = smul.addr %s13, 8
      %s17 = scalar_lea.hbm %s0, %s16
      %s18 = sshll.u32 %s17, 4
      %s19 = int_to_ptr.hbm [resolvable:$true] %s18
      %s20 = sshll.u32 [#allocation2], 4
      %s21 = int_to_ptr.vmem [resolvable:$true] %s20
      %26 = dma.hbm_to_vmem [thread:$0]  %s19, 256, %s21, [#allocation3], 128, 128, 8
    $region5: #{tpu_custom_call.1} parent=1 // pred_fallthru
      _
    // Predicated region
    $region6: #{tpu_custom_call.1} parent=1 // pred_check
      _
    $region7: #{tpu_custom_call.1} parent=1 // pred_check_branch
      %28 = sbr.rel (0) target = $region9
    $region8: #{tpu_custom_call.1} parent=1 // pred_region
      %s29 = sadd.s32 0, 0
      %s30 = smul.u32 2, %s29
      %32 = vsyncadd [#allocation6], 0
      %s33 = smul.addr %s30, 8
      %s34 = scalar_lea.hbm %s1, %s33
      %s35 = sshll.u32 %s34, 4
      %s36 = int_to_ptr.hbm [resolvable:$true] %s35
      %s37 = sshll.u32 [#allocation5], 4
      %s38 = int_to_ptr.vmem [resolvable:$true] %s37
      %43 = dma.hbm_to_vmem [thread:$0]  %s36, 256, %s38, [#allocation6], 128, 128, 8
    $region9: #{tpu_custom_call.1} parent=1 // pred_fallthru
      _
    // Predicated region
    $region10: #{tpu_custom_call.1} parent=1 // pred_check
      _
    $region11: #{tpu_custom_call.1} parent=1 // pred_check_branch
      %45 = sbr.rel (0) target = $region13
    $region12: #{tpu_custom_call.1} parent=1 // pred_region
      %47 = dma.done [#allocation3], 256
    $region13: #{tpu_custom_call.1} parent=1 // pred_fallthru
      _
    // Predicated region
    $region14: #{tpu_custom_call.1} parent=1 // pred_check
      _
    $region15: #{tpu_custom_call.1} parent=1 // pred_check_branch
      %49 = sbr.rel (0) target = $region17
    $region16: #{tpu_custom_call.1} parent=1 // pred_region
      %51 = dma.done [#allocation6], 256
    $region17: #{tpu_custom_call.1} parent=1 // pred_fallthru
      _
    %s52 = sadd.s32 0, 0
    %s53 = smul.u32 2, %s52
    %s54 = sadd.s32 0, 0
    %s55 = smul.u32 2, %s54
    %p56 = scmp.eq.s32.totalorder 0, 0
    // Predicated region
    $region18: #{tpu_custom_call.1} parent=1 // pred_check
      %p57 = pneg %p56
    $region19: #{tpu_custom_call.1} parent=1 // pred_check_branch
      %59 = sbr.rel (%p57) target = $region21
    $region20: #{tpu_custom_call.1} parent=1 // pred_region
      %60 = vst [vmem:[#allocation7] sm:$0xff] 0.0
      %61 = vst [vmem:[#allocation7 + $0x8] sm:$0xff] 0.0
      %62 = vst [vmem:[#allocation7 + $0x10] sm:$0xff] 0.0
      %63 = vst [vmem:[#allocation7 + $0x18] sm:$0xff] 0.0
      %64 = vst [vmem:[#allocation7 + $0x20] sm:$0xff] 0.0
    $region21: #{tpu_custom_call.1} parent=1 // pred_fallthru
      _
    %v65 = vld [vmem:[#allocation2] sm:$0xff]
    %v66 = vld [vmem:[#allocation2 + $0x8] sm:$0xff]
    %v67 = vld [vmem:[#allocation5] sm:$0xff]
    %v68 = vld [vmem:[#allocation5 + $0x8] sm:$0xff]
    %v69 = vlog2.pop %v65
    %v70 = vmul.f32 %v69, 0.6931472
    %v71 = vlog2.pop %v66
    %v72 = vmul.f32 %v71, 0.6931472
    %v73 = vmax.f32 %v70, -100.0
    %v74 = vmax.f32 %v72, -100.0
    %v75 = vsub.f32 1.0, %v65
    %v76 = vsub.f32 1.0, %v66
    %v77 = vlog2.pop %v75
    %v78 = vmul.f32 %v77, 0.6931472
    %v79 = vlog2.pop %v76
    %v80 = vmul.f32 %v79, 0.6931472
    %v81 = vmax.f32 %v78, -100.0
    %v82 = vmax.f32 %v80, -100.0
    %v83 = vmul.f32 %v67, %v73
    %v84 = vmul.f32 %v68, %v74
    %v85 = vsub.f32 1.0, %v67
    %v86 = vsub.f32 1.0, %v68
    %v87 = vmul.f32 %v85, %v81
    %v88 = vmul.f32 %v86, %v82
    %v89 = vadd.f32 %v83, %v87
    %v90 = vadd.f32 %v84, %v88
    %v91 = vsub.f32 0.0, %v89
    %v92 = vsub.f32 0.0, %v90
    %v93 = vmul.f32 %v65, %v67
    %v94 = vmul.f32 %v66, %v68
    %v95 = vmul.f32 %v75, %v85
    %v96 = vmul.f32 %v76, %v86
    %v97 = vadd.f32 %v93, %v95
    %v98 = vadd.f32 %v94, %v96
    %v99 = vsub.f32 1.0, %v97
    %v100 = vsub.f32 1.0, %v98
    %v101 = vadd.f32 %v93, %v94
    %v102 = vadd.f32 %v101, 0.0
    %v103 = vadd.f32 %v65, %v66
    %v104 = vadd.f32 %v103, 0.0
    %v105 = vadd.f32 %v67, %v68
    %v106 = vadd.f32 %v105, 0.0
    %v107 = vadd.f32 %v91, %v92
    %v108 = vadd.f32 %v107, 0.0
    %v109 = vmul.f32 %v99, %v99
    %v110 = vmul.f32 %v100, %v100
    %v111 = vmul.f32 %v67, %v109
    %v112 = vmul.f32 %v68, %v110
    %v113 = vmul.f32 %v111, %v91
    %v114 = vmul.f32 %v112, %v92
    %v115 = vadd.f32 %v113, %v114
    %v116 = vadd.f32 %v115, 0.0
    %v117 = vld [vmem:[#allocation7] sm:$0xff]
    %v118 = vadd.f32 %v117, %v102
    %119 = vst [vmem:[#allocation7] sm:$0xff] %v118
    %s120 = scalar_lea.vmem [#allocation7], 8
    %v121 = vld [vmem:[%s120] sm:$0xff]
    %v122 = vadd.f32 %v121, %v104
    %123 = vst [vmem:[%s120] sm:$0xff] %v122
    %s124 = scalar_lea.vmem [#allocation7], 16
    %v125 = vld [vmem:[%s124] sm:$0xff]
    %v126 = vadd.f32 %v125, %v106
    %127 = vst [vmem:[%s124] sm:$0xff] %v126
    %s128 = scalar_lea.vmem [#allocation7], 24
    %v129 = vld [vmem:[%s128] sm:$0xff]
    %v130 = vadd.f32 %v129, %v116
    %131 = vst [vmem:[%s128] sm:$0xff] %v130
    %s132 = scalar_lea.vmem [#allocation7], 32
    %v133 = vld [vmem:[%s132] sm:$0xff]
    %v134 = vadd.f32 %v133, %v108
    %135 = vst [vmem:[%s132] sm:$0xff] %v134
    // Predicated region
    $region22: #{tpu_custom_call.1} parent=1 // pred_check
      _
    $region23: #{tpu_custom_call.1} parent=1 // pred_check_branch
      %137 = sbr.rel (0) target = $region25
    $region24: #{tpu_custom_call.1} parent=1 // pred_region
      %139 = vsyncadd [#allocation4], 0
      %s140 = sshll.u32 [#allocation7], 4
      %s141 = int_to_ptr.vmem [resolvable:$true] %s140
      %s142 = sshll.u32 %s2, 4
      %s143 = int_to_ptr.hbm [resolvable:$true] %s142
      %148 = dma.vmem_to_hbm [thread:$0]  %s141, 640, %s143, [#allocation4], 128, 128, 8
    $region25: #{tpu_custom_call.1} parent=1 // pred_fallthru
      _
    // Predicated region
    $region26: #{tpu_custom_call.1} parent=1 // pred_check
      _
    $region27: #{tpu_custom_call.1} parent=1 // pred_check_branch
      %150 = sbr.rel (0) target = $region29
    $region28: #{tpu_custom_call.1} parent=1 // pred_region
      %152 = dma.done [#allocation4], 640
    $region29: #{tpu_custom_call.1} parent=1 // pred_fallthru
      _
    %153 = vsyncpa [#allocation3], 1
    %154 = vsyncpa [#allocation6], 1
    %155 = vsyncpa [#allocation4], 1

</llo_original>
